<compile_context>
chip_gen: v7x
topology: tpu7x:2x2x1
jax: 0.10.0
libtpu: 0.0.40
codegen_flags: <defaults>
</compile_context>

<pallas_src>
import jax
import jax.numpy as jnp
from jax.experimental import pallas as pl
from jax.experimental.pallas import tpu as pltpu


def _round_up(n: int, m: int) -> int:
    return ((n + m - 1) // m) * m


def critic_kernel(xT_ref, w1_ref, b1_ref, w2_ref, b2_ref, w3_ref, b3_ref, out_ref):
    xT = xT_ref[...]                                              # (F, TB) f32, batch on lanes

    # fc1 + ReLU : (H, F) @ (F, TB) -> (H, TB)
    h1 = jnp.dot(w1_ref[...], xT, preferred_element_type=jnp.float32) + b1_ref[...]
    h1 = jnp.maximum(h1, 0.0)

    # fc2 + ReLU : (H, H) @ (H, TB) -> (H, TB)
    h2 = jnp.dot(w2_ref[...], h1, preferred_element_type=jnp.float32) + b2_ref[...]
    h2 = jnp.maximum(h2, 0.0)

    # fc3 (single output unit): VPU multiply + sublane reduce instead of an N=1 MXU matmul.
    # w3_ref: (H, 1) column, b3_ref: (1, 1). Result is already lane-dense (1, TB).
    out = jnp.sum(h2 * w3_ref[...], axis=0, keepdims=True) + b3_ref[...]
    out_ref[...] = out.astype(out_ref.dtype)


def critic_forward(x, params, *, batch_tile=512):
    """x: (B, n_features) f32.  params: w1 (H,F), b1 (H,1), w2 (H,H), b2 (H,1), w3 (H,1), b3 (1,1)."""
    B, F = x.shape
    w1, b1 = params["w1"], params["b1"]
    w2, b2 = params["w2"], params["b2"]
    w3, b3 = params["w3"], params["b3"]

    # Lane-aligned batch tile; pad the batch so every grid step sees a full tile.
    TB = min(batch_tile, _round_up(B, 128))
    TB = _round_up(TB, 128)
    B_pad = _round_up(B, TB)
    num_tiles = B_pad // TB

    # Batch on the lane axis: lane-dense x tiles and output tiles.
    xT = jnp.pad(x.T, ((0, 0), (0, B_pad - B)))                   # (F, B_pad)

    def resident(shape):
        # Weights/biases: fetched once, VMEM-resident across all grid steps.
        return pl.BlockSpec(shape, lambda i: (0, 0))

    out = pl.pallas_call(
        critic_kernel,
        out_shape=jax.ShapeDtypeStruct((1, B_pad), jnp.float32),
        grid=(num_tiles,),
        in_specs=[
            pl.BlockSpec((F, TB), lambda i: (0, i)),              # x^T tile, pipelined
            resident(w1.shape), resident(b1.shape),
            resident(w2.shape), resident(b2.shape),
            resident(w3.shape), resident(b3.shape),
        ],
        out_specs=pl.BlockSpec((1, TB), lambda i: (0, i)),        # lane-dense output tile
        compiler_params=pltpu.CompilerParams(
            dimension_semantics=("parallel",),                    # megacore split on v7x
            vmem_limit_bytes=32 * 1024 * 1024,
        ),
    )(xT, w1, b1, w2, b2, w3, b3)

    return out[0, :B].reshape(B, 1)


def init_params(key, n_features, hidden_size):
    """Deterministic init mimicking nn.Linear (uniform +-1/sqrt(fan_in)).
    Weights are stored in PyTorch (out_features, in_features) layout; biases as columns."""
    ks = jax.random.split(key, 6)

    def linear(kw, kb, fan_in, fan_out):
        bound = 1.0 / jnp.sqrt(fan_in)
        w = jax.random.uniform(kw, (fan_out, fan_in), jnp.float32, -bound, bound)
        b = jax.random.uniform(kb, (fan_out, 1), jnp.float32, -bound, bound)
        return w, b

    w1, b1 = linear(ks[0], ks[1], n_features, hidden_size)        # (H, F), (H, 1)
    w2, b2 = linear(ks[2], ks[3], hidden_size, hidden_size)       # (H, H), (H, 1)
    w3t, b3 = linear(ks[4], ks[5], hidden_size, 1)                # (1, H), (1, 1)
    return {"w1": w1, "b1": b1, "w2": w2, "b2": b2,
            "w3": w3t.T, "b3": b3}                                # w3 stored as (H, 1)


def critic_ref(x, p):
    """Pure-JAX reference (standard batch-major layout) for correctness check."""
    h1 = jnp.maximum(x @ p["w1"].T + p["b1"].T, 0.0)
    h2 = jnp.maximum(h1 @ p["w2"].T + p["b2"].T, 0.0)
    return h2 @ p["w3"] + p["b3"]


if __name__ == "__main__":
    key = jax.random.PRNGKey(0)
    n_features, hidden_size, batch = 4, 20, 8

    pkey, xkey, xkey2 = jax.random.split(key, 3)
    params = init_params(pkey, n_features, hidden_size)

    # Small demo batch (single grid tile).
    x = jax.random.normal(xkey, (batch, n_features), jnp.float32)
    out = jax.block_until_ready(critic_forward(x, params))
    ref = critic_ref(x, params)
    assert out.shape == (batch, 1), out.shape
    assert jnp.allclose(out, ref, atol=1e-4, rtol=1e-4), (out, ref)

    # Multi-tile path (batch not divisible by the tile): exercises the grid + padding logic.
    x2 = jax.random.normal(xkey2, (300, n_features), jnp.float32)
    out2 = jax.block_until_ready(critic_forward(x2, params, batch_tile=128))
    ref2 = critic_ref(x2, params)
    assert out2.shape == (300, 1), out2.shape
    assert jnp.allclose(out2, ref2, atol=1e-4, rtol=1e-4)

    print("KERNEL_OK")
</pallas_src>

<mosaic_0001>
module attributes {stable_mosaic.version = 11 : i64} {
  func.func @critic_kernel(%arg0: i32, %arg1: memref<4x128xf32, #tpu.memory_space<vmem>>, %arg2: memref<20x4xf32, #tpu.memory_space<vmem>>, %arg3: memref<20x1xf32, #tpu.memory_space<vmem>>, %arg4: memref<20x20xf32, #tpu.memory_space<vmem>>, %arg5: memref<20x1xf32, #tpu.memory_space<vmem>>, %arg6: memref<20x1xf32, #tpu.memory_space<vmem>>, %arg7: memref<1x1xf32, #tpu.memory_space<vmem>>, %arg8: memref<1x128xf32, #tpu.memory_space<vmem>>) attributes {dimension_semantics = [#tpu.dimension_semantics<parallel>], iteration_bounds = array<i64: 1>, scalar_prefetch = 0 : i64, scratch_operands = 0 : i64, tpu.core_type = #tpu.core_type<tc>, window_params = [{transform_indices = @transform_0, window_bounds = array<i64: 4, 128>}, {pipeline_mode = #tpu.pipeline_mode<synchronous>, transform_indices = @transform_1, window_bounds = array<i64: 20, 4>}, {pipeline_mode = #tpu.pipeline_mode<synchronous>, transform_indices = @transform_2, window_bounds = array<i64: 20, 1>}, {pipeline_mode = #tpu.pipeline_mode<synchronous>, transform_indices = @transform_3, window_bounds = array<i64: 20, 20>}, {pipeline_mode = #tpu.pipeline_mode<synchronous>, transform_indices = @transform_4, window_bounds = array<i64: 20, 1>}, {pipeline_mode = #tpu.pipeline_mode<synchronous>, transform_indices = @transform_5, window_bounds = array<i64: 20, 1>}, {pipeline_mode = #tpu.pipeline_mode<synchronous>, transform_indices = @transform_6, window_bounds = array<i64: 1, 1>}, {transform_indices = @transform_7, window_bounds = array<i64: 1, 128>}]} {
    %c0 = arith.constant 0 : index
    %c0_0 = arith.constant 0 : index
    %0 = vector.load %arg1[%c0, %c0_0] : memref<4x128xf32, #tpu.memory_space<vmem>>, vector<4x128xf32>
    %c0_1 = arith.constant 0 : index
    %c0_2 = arith.constant 0 : index
    %1 = vector.load %arg2[%c0_1, %c0_2] : memref<20x4xf32, #tpu.memory_space<vmem>>, vector<20x4xf32>
    %cst = arith.constant dense<0.000000e+00> : vector<20x128xf32>
    %2 = tpu.matmul %1, %0, %cst {dimension_numbers = #tpu.dot_dimension_numbers<[1], [0], [0], [1], [0, 0, 1, 1], [], []>} : vector<20x4xf32>, vector<4x128xf32>, vector<20x128xf32> -> vector<20x128xf32>
    %c0_3 = arith.constant 0 : index
    %c0_4 = arith.constant 0 : index
    %3 = vector.load %arg3[%c0_3, %c0_4] : memref<20x1xf32, #tpu.memory_space<vmem>>, vector<20x1xf32>
    %4 = vector.broadcast %3 : vector<20x1xf32> to vector<20x128xf32>
    %5 = arith.addf %2, %4 : vector<20x128xf32>
    %cst_5 = arith.constant 0.000000e+00 : f32
    %6 = vector.broadcast %cst_5 : f32 to vector<20x128xf32>
    %7 = arith.maximumf %5, %6 : vector<20x128xf32>
    %c0_6 = arith.constant 0 : index
    %c0_7 = arith.constant 0 : index
    %8 = vector.load %arg4[%c0_6, %c0_7] : memref<20x20xf32, #tpu.memory_space<vmem>>, vector<20x20xf32>
    %cst_8 = arith.constant dense<0.000000e+00> : vector<20x128xf32>
    %9 = tpu.matmul %8, %7, %cst_8 {dimension_numbers = #tpu.dot_dimension_numbers<[1], [0], [0], [1], [0, 0, 1, 1], [], []>} : vector<20x20xf32>, vector<20x128xf32>, vector<20x128xf32> -> vector<20x128xf32>
    %c0_9 = arith.constant 0 : index
    %c0_10 = arith.constant 0 : index
    %10 = vector.load %arg5[%c0_9, %c0_10] : memref<20x1xf32, #tpu.memory_space<vmem>>, vector<20x1xf32>
    %11 = vector.broadcast %10 : vector<20x1xf32> to vector<20x128xf32>
    %12 = arith.addf %9, %11 : vector<20x128xf32>
    %cst_11 = arith.constant 0.000000e+00 : f32
    %13 = vector.broadcast %cst_11 : f32 to vector<20x128xf32>
    %14 = arith.maximumf %12, %13 : vector<20x128xf32>
    %c0_12 = arith.constant 0 : index
    %c0_13 = arith.constant 0 : index
    %15 = vector.load %arg6[%c0_12, %c0_13] : memref<20x1xf32, #tpu.memory_space<vmem>>, vector<20x1xf32>
    %16 = vector.broadcast %15 : vector<20x1xf32> to vector<20x128xf32>
    %17 = arith.mulf %14, %16 : vector<20x128xf32>
    %cst_14 = arith.constant dense<0.000000e+00> : vector<128xf32>
    %18 = vector.multi_reduction <add>, %17, %cst_14 [0] : vector<20x128xf32> to vector<128xf32>
    %19 = vector.shape_cast %18 : vector<128xf32> to vector<1x128xf32>
    %c0_15 = arith.constant 0 : index
    %c0_16 = arith.constant 0 : index
    %20 = vector.load %arg7[%c0_15, %c0_16] : memref<1x1xf32, #tpu.memory_space<vmem>>, vector<1x1xf32>
    %21 = vector.broadcast %20 : vector<1x1xf32> to vector<1x128xf32>
    %22 = arith.addf %19, %21 : vector<1x128xf32>
    %c0_17 = arith.constant 0 : index
    %c0_18 = arith.constant 0 : index
    %23 = vector.load %arg8[%c0_17, %c0_18] : memref<1x128xf32, #tpu.memory_space<vmem>>, vector<1x128xf32>
    tpu.vector_store %arg8[%c0_17, %c0_18], %22 {strides = array<i32>} : memref<1x128xf32, #tpu.memory_space<vmem>>, vector<1x128xf32>,
    return
  }
  func.func @transform_0(%arg0: i32) -> (i32, i32) {
    %c0_i32 = arith.constant 0 : i32
    %c0_i32_0 = arith.constant 0 : i32
    return %c0_i32, %arg0 : i32, i32
  }
  func.func @transform_1(%arg0: i32) -> (i32, i32) {
    %c0_i32 = arith.constant 0 : i32
    %c0_i32_0 = arith.constant 0 : i32
    %c0_i32_1 = arith.constant 0 : i32
    return %c0_i32, %c0_i32_0 : i32, i32
  }
  func.func @transform_2(%arg0: i32) -> (i32, i32) {
    %c0_i32 = arith.constant 0 : i32
    %c0_i32_0 = arith.constant 0 : i32
    %c0_i32_1 = arith.constant 0 : i32
    return %c0_i32, %c0_i32_0 : i32, i32
  }
  func.func @transform_3(%arg0: i32) -> (i32, i32) {
    %c0_i32 = arith.constant 0 : i32
    %c0_i32_0 = arith.constant 0 : i32
    %c0_i32_1 = arith.constant 0 : i32
    return %c0_i32, %c0_i32_0 : i32, i32
  }
  func.func @transform_4(%arg0: i32) -> (i32, i32) {
    %c0_i32 = arith.constant 0 : i32
    %c0_i32_0 = arith.constant 0 : i32
    %c0_i32_1 = arith.constant 0 : i32
    return %c0_i32, %c0_i32_0 : i32, i32
  }
  func.func @transform_5(%arg0: i32) -> (i32, i32) {
    %c0_i32 = arith.constant 0 : i32
    %c0_i32_0 = arith.constant 0 : i32
    %c0_i32_1 = arith.constant 0 : i32
    return %c0_i32, %c0_i32_0 : i32, i32
  }
  func.func @transform_6(%arg0: i32) -> (i32, i32) {
    %c0_i32 = arith.constant 0 : i32
    %c0_i32_0 = arith.constant 0 : i32
    %c0_i32_1 = arith.constant 0 : i32
    return %c0_i32, %c0_i32_0 : i32, i32
  }
  func.func @transform_7(%arg0: i32) -> (i32, i32) {
    %c0_i32 = arith.constant 0 : i32
    %c0_i32_0 = arith.constant 0 : i32
    return %c0_i32, %arg0 : i32, i32
  }
}

</mosaic_0001>

<llo_original>
// kernel: tpu_custom_call.1
$region0: #{tpu_custom_call.1}
  #allocation0 [shape = 'u32[]', space=smem, size = 0x4, offset = 0x4, fixed_abs, tag = 'smem constant byte address 0x4 - core index']
  #allocation1 [shape = 'u32[144,128]{1,0:T(1,128)}', space=vmem, size = 0x12000, scoped, tag = 'internal scratch']
  #allocation2 [shape = 'f32[1,1]{1,0:T(1,128)S(1)}', space=vmem, size = 0x200, scoped, tag = 'scoped memory for tpu_custom_call.1']
  %s0 = inlined_call_operand.vmem [shape: f32[4,128], index: 0, kind: input, shape index: {}]
  %s1 = inlined_call_operand.vmem [shape: f32[20,4], index: 1, kind: input, shape index: {}]
  %s2 = inlined_call_operand.vmem [shape: f32[20,1], index: 2, kind: input, shape index: {}]
  %s3 = inlined_call_operand.vmem [shape: f32[20,20], index: 3, kind: input, shape index: {}]
  %s4 = inlined_call_operand.vmem [shape: f32[20,1], index: 4, kind: input, shape index: {}]
  %s5 = inlined_call_operand.vmem [shape: f32[20,1], index: 5, kind: input, shape index: {}]
  %s6 = inlined_call_operand.<no memory space> [shape: f32[1,1], index: 6, kind: input, shape index: {}]
  %s7 = inlined_call_operand.hbm [shape: f32[1,128], index: 7, kind: output, shape index: {}]
  %s8 = sld [smem:[#allocation0]]
  $region38: #{tpu_custom_call.1} parent=0
    _
  %s10 = ssub.s32 1, %s8
  %s11 = scalar_select 0, %s10, %s8
  %v12 = vstv %s6
  %13 = vst [vmem:[#allocation2] sm:$0x1] %v12
  $region1: #{tpu_custom_call.1} parent=0
    #allocation3 [shape = 'u8[512]{0}', space=vmem, size = 0x400, scoped, tag = 'output window, operand 0, single buffered']
    #allocation4 [shape = 's32[1]{0}', space=sflag, size = 0x4, scoped, tag = 'scoped memory for tpu_custom_call.1']
    %14 = vsyncpa [#allocation4], 0
    // Predicated region
    $region2: #{tpu_custom_call.1} parent=1 // pred_check
      _
    $region3: #{tpu_custom_call.1} parent=1 // pred_check_branch
      %16 = sbr.rel (0) target = $region5
    $region4: #{tpu_custom_call.1} parent=1 // pred_region
      _
    $region5: #{tpu_custom_call.1} parent=1 // pred_fallthru
      _
    // Predicated region
    $region6: #{tpu_custom_call.1} parent=1 // pred_check
      _
    $region7: #{tpu_custom_call.1} parent=1 // pred_check_branch
      %18 = sbr.rel (0) target = $region9
    $region8: #{tpu_custom_call.1} parent=1 // pred_region
      _
    $region9: #{tpu_custom_call.1} parent=1 // pred_fallthru
      _
    // Predicated region
    $region10: #{tpu_custom_call.1} parent=1 // pred_check
      _
    $region11: #{tpu_custom_call.1} parent=1 // pred_check_branch
      %20 = sbr.rel (0) target = $region13
    $region12: #{tpu_custom_call.1} parent=1 // pred_region
      _
    $region13: #{tpu_custom_call.1} parent=1 // pred_fallthru
      _
    // Predicated region
    $region14: #{tpu_custom_call.1} parent=1 // pred_check
      _
    $region15: #{tpu_custom_call.1} parent=1 // pred_check_branch
      %22 = sbr.rel (0) target = $region17
    $region16: #{tpu_custom_call.1} parent=1 // pred_region
      _
    $region17: #{tpu_custom_call.1} parent=1 // pred_fallthru
      _
    // Predicated region
    $region18: #{tpu_custom_call.1} parent=1 // pred_check
      _
    $region19: #{tpu_custom_call.1} parent=1 // pred_check_branch
      %24 = sbr.rel (0) target = $region21
    $region20: #{tpu_custom_call.1} parent=1 // pred_region
      _
    $region21: #{tpu_custom_call.1} parent=1 // pred_fallthru
      _
    // Predicated region
    $region22: #{tpu_custom_call.1} parent=1 // pred_check
      _
    $region23: #{tpu_custom_call.1} parent=1 // pred_check_branch
      %26 = sbr.rel (0) target = $region25
    $region24: #{tpu_custom_call.1} parent=1 // pred_region
      _
    $region25: #{tpu_custom_call.1} parent=1 // pred_fallthru
      _
    // Predicated region
    $region26: #{tpu_custom_call.1} parent=1 // pred_check
      _
    $region27: #{tpu_custom_call.1} parent=1 // pred_check_branch
      %28 = sbr.rel (0) target = $region29
    $region28: #{tpu_custom_call.1} parent=1 // pred_region
      _
    $region29: #{tpu_custom_call.1} parent=1 // pred_fallthru
      _
    %v29 = vld [vmem:[%s0] sm:$0xf]
    %v30 = vld [vmem:[%s1] sm:$0xff]
    %v31 = vld [vmem:[%s1 + $0x8] sm:$0xff]
    %v32 = vld [vmem:[%s1 + $0x10] sm:$0xf]
    %v33 = vld [vmem:[%s2] sm:$0xff]
    %v34 = vld [vmem:[%s2 + $0x8] sm:$0xff]
    %v35 = vld [vmem:[%s2 + $0x10] sm:$0xf]
    %37 = vset.pattern.permute.xlu0 0
    %38 = vperm.xlu0 %37, %v33
    %v39 = vpop.permute.xlu0 %38
    %42 = vset.pattern.permute.xlu0 0
    %43 = vperm.xlu0 %42, %v34
    %v44 = vpop.permute.xlu0 %43
    %47 = vset.pattern.permute.xlu0 0
    %48 = vperm.xlu0 %47, %v35
    %v49 = vpop.permute.xlu0 %48
    %vm51 = vcmask 31744
    %v53 = vsel %vm51, %v30, 0
    %v56 = vsel %vm51, %v31, 0
    %v59 = vsel %vm51, %v32, 0
    %vm61 = vcmask 1043456
    %v63 = vsel %vm61, %v29, 0
    %65 = vmatprep.subr.mxu0 0.0
    %66 = vmatpush1.msra.mxu0 %v63
    %67 = vmatprep.subr.mxu0 0.0
    %68 = vmatpush1.msra.mxu0 0.0
    %69 = vmatprep.subr.mxu0 0.0
    %70 = vmatpush1.msra.mxu0 0.0
    %71 = vmatprep.subr.mxu0 0.0
    %72 = vmatpush1.msra.mxu0 0.0
    %73 = vmatprep.subr.mxu0 0.0
    %74 = vmatpush1.msra.mxu0 0.0
    %75 = vmatprep.subr.mxu0 0.0
    %76 = vmatpush1.msra.mxu0 0.0
    %77 = vmatprep.subr.mxu0 0.0
    %78 = vmatpush1.msra.mxu0 0.0
    %79 = vmatprep.subr.mxu0 0.0
    %80 = vmatpush1.msra.mxu0 0.0
    %81 = vmatprep.subr.mxu0 0.0
    %82 = vmatpush1.msra.mxu0 0.0
    %83 = vmatprep.subr.mxu0 0.0
    %84 = vmatpush1.msra.mxu0 0.0
    %85 = vmatprep.subr.mxu0 0.0
    %86 = vmatpush1.msra.mxu0 0.0
    %87 = vmatprep.subr.mxu0 0.0
    %88 = vmatpush1.msra.mxu0 0.0
    %89 = vmatprep.subr.mxu0 0.0
    %90 = vmatpush1.msra.mxu0 0.0
    %91 = vmatprep.subr.mxu0 0.0
    %92 = vmatpush1.msra.mxu0 0.0
    %93 = vmatprep.subr.mxu0 0.0
    %94 = vmatpush1.msra.mxu0 0.0
    %95 = vmatprep.subr.mxu0 0.0
    %96 = vmatpush1.msra.mxu0 0.0
    %97 = vmatprep.subr.mxu0 0.0
    %98 = vmatpush1.msra.mxu0 0.0
    %99 = vmatprep.subr.mxu0 0.0
    %100 = vmatpush1.msra.mxu0 0.0
    %101 = vmatprep.subr.mxu0 0.0
    %102 = vmatpush1.msra.mxu0 0.0
    %103 = vmatprep.subr.mxu0 0.0
    %104 = vmatpush1.msra.mxu0 0.0
    %105 = vmatprep.subr.mxu0 0.0
    %106 = vmatpush1.msra.mxu0 0.0
    %107 = vmatprep.subr.mxu0 0.0
    %108 = vmatpush1.msra.mxu0 0.0
    %109 = vmatprep.subr.mxu0 0.0
    %110 = vmatpush1.msra.mxu0 0.0
    %111 = vmatprep.subr.mxu0 0.0
    %112 = vmatpush1.msra.mxu0 0.0
    %113 = vmatprep.subr.mxu0 0.0
    %114 = vmatpush1.msra.mxu0 0.0
    %115 = vmatprep.subr.mxu0 0.0
    %116 = vmatpush1.msra.mxu0 0.0
    %117 = vmatprep.subr.mxu0 0.0
    %118 = vmatpush1.msra.mxu0 0.0
    %119 = vmatprep.subr.mxu0 0.0
    %120 = vmatpush1.msra.mxu0 0.0
    %121 = vmatprep.subr.mxu0 0.0
    %122 = vmatpush1.msra.mxu0 0.0
    %123 = vmatprep.subr.mxu0 0.0
    %124 = vmatpush1.msra.mxu0 0.0
    %125 = vmatprep.subr.mxu0 0.0
    %126 = vmatpush1.msra.mxu0 0.0
    %127 = vmatprep.subr.mxu0 0.0
    %128 = vmatpush1.msra.mxu0 0.0
    %129 = vmatprep.mubr.f32.mxu0 0.0
    %130 = vmatmul.mubr.f32.gmra.mrb[0].mxu0 %v53
    %v131 = vpop.f32.mrb[0].mxu0
    %v132 = vadd.f32 %v39, %v131
    %v133 = vpop.f32.mrb[0].mxu0
    %134 = vmatprep.mubr.f32.mxu0 0.0
    %135 = vmatmul.mubr.f32.gmra.mrb[0].mxu0 %v56
    %v136 = vpop.f32.mrb[0].mxu0
    %v137 = vadd.f32 %v44, %v136
    %v138 = vpop.f32.mrb[0].mxu0
    %139 = vmatprep.mubr.f32.mxu0 0.0
    %140 = vmatmul.mubr.f32.gmra.mrb[0].mxu0 %v59
    %v141 = vpop.f32.mrb[0].mxu0
    %v142 = vadd.f32 %v49, %v141
    %v143 = vpop.f32.mrb[0].mxu0
    %144 = vdwg.mxu0
    %v145 = vmax.f32 %v132, 0.0
    %v146 = vmax.f32 %v137, 0.0
    %v147 = vmax.f32 %v142, 0.0
    %v148 = vld [vmem:[%s3] sm:$0xff]
    %v149 = vld [vmem:[%s3 + $0x8] sm:$0xff]
    %v150 = vld [vmem:[%s3 + $0x10] sm:$0xf]
    %v151 = vld [vmem:[%s4] sm:$0xff]
    %v152 = vld [vmem:[%s4 + $0x8] sm:$0xff]
    %v153 = vld [vmem:[%s4 + $0x10] sm:$0xf]
    %155 = vset.pattern.permute.xlu0 0
    %156 = vperm.xlu0 %155, %v151
    %v157 = vpop.permute.xlu0 %156
    %160 = vset.pattern.permute.xlu0 0
    %161 = vperm.xlu0 %160, %v152
    %v162 = vpop.permute.xlu0 %161
    %165 = vset.pattern.permute.xlu0 0
    %166 = vperm.xlu0 %165, %v153
    %v167 = vpop.permute.xlu0 %166
    %vm169 = vcmask 162816
    %v171 = vsel %vm169, %v148, 0
    %v174 = vsel %vm169, %v149, 0
    %v177 = vsel %vm169, %v150, 0
    %v180 = vsel %vm61, %v147, 0
    %182 = vmatprep.subr.mxu0 0.0
    %183 = vmatpush1.msra.mxu0 %v145
    %184 = vmatprep.subr.mxu0 0.0
    %185 = vmatpush1.msra.mxu0 %v146
    %186 = vmatprep.subr.mxu0 0.0
    %187 = vmatpush1.msra.mxu0 %v180
    %188 = vmatprep.subr.mxu0 0.0
    %189 = vmatpush1.msra.mxu0 0.0
    %190 = vmatprep.subr.mxu0 0.0
    %191 = vmatpush1.msra.mxu0 0.0
    %192 = vmatprep.subr.mxu0 0.0
    %193 = vmatpush1.msra.mxu0 0.0
    %194 = vmatprep.subr.mxu0 0.0
    %195 = vmatpush1.msra.mxu0 0.0
    %196 = vmatprep.subr.mxu0 0.0
    %197 = vmatpush1.msra.mxu0 0.0
    %198 = vmatprep.subr.mxu0 0.0
    %199 = vmatpush1.msra.mxu0 0.0
    %200 = vmatprep.subr.mxu0 0.0
    %201 = vmatpush1.msra.mxu0 0.0
    %202 = vmatprep.subr.mxu0 0.0
    %203 = vmatpush1.msra.mxu0 0.0
    %204 = vmatprep.subr.mxu0 0.0
    %205 = vmatpush1.msra.mxu0 0.0
    %206 = vmatprep.subr.mxu0 0.0
    %207 = vmatpush1.msra.mxu0 0.0
    %208 = vmatprep.subr.mxu0 0.0
    %209 = vmatpush1.msra.mxu0 0.0
    %210 = vmatprep.subr.mxu0 0.0
    %211 = vmatpush1.msra.mxu0 0.0
    %212 = vmatprep.subr.mxu0 0.0
    %213 = vmatpush1.msra.mxu0 0.0
    %214 = vmatprep.subr.mxu0 0.0
    %215 = vmatpush1.msra.mxu0 0.0
    %216 = vmatprep.subr.mxu0 0.0
    %217 = vmatpush1.msra.mxu0 0.0
    %218 = vmatprep.subr.mxu0 0.0
    %219 = vmatpush1.msra.mxu0 0.0
    %220 = vmatprep.subr.mxu0 0.0
    %221 = vmatpush1.msra.mxu0 0.0
    %222 = vmatprep.subr.mxu0 0.0
    %223 = vmatpush1.msra.mxu0 0.0
    %224 = vmatprep.subr.mxu0 0.0
    %225 = vmatpush1.msra.mxu0 0.0
    %226 = vmatprep.subr.mxu0 0.0
    %227 = vmatpush1.msra.mxu0 0.0
    %228 = vmatprep.subr.mxu0 0.0
    %229 = vmatpush1.msra.mxu0 0.0
    %230 = vmatprep.subr.mxu0 0.0
    %231 = vmatpush1.msra.mxu0 0.0
    %232 = vmatprep.subr.mxu0 0.0
    %233 = vmatpush1.msra.mxu0 0.0
    %234 = vmatprep.subr.mxu0 0.0
    %235 = vmatpush1.msra.mxu0 0.0
    %236 = vmatprep.subr.mxu0 0.0
    %237 = vmatpush1.msra.mxu0 0.0
    %238 = vmatprep.subr.mxu0 0.0
    %239 = vmatpush1.msra.mxu0 0.0
    %240 = vmatprep.subr.mxu0 0.0
    %241 = vmatpush1.msra.mxu0 0.0
    %242 = vmatprep.subr.mxu0 0.0
    %243 = vmatpush1.msra.mxu0 0.0
    %244 = vmatprep.subr.mxu0 0.0
    %245 = vmatpush1.msra.mxu0 0.0
    %246 = vmatprep.mubr.f32.mxu0 0.0
    %247 = vmatmul.mubr.f32.gmra.mrb[0].mxu0 %v171
    %v248 = vpop.f32.mrb[0].mxu0
    %v249 = vadd.f32 %v157, %v248
    %v250 = vpop.f32.mrb[0].mxu0
    %251 = vmatprep.mubr.f32.mxu0 0.0
    %252 = vmatmul.mubr.f32.gmra.mrb[0].mxu0 %v174
    %v253 = vpop.f32.mrb[0].mxu0
    %v254 = vadd.f32 %v162, %v253
    %v255 = vpop.f32.mrb[0].mxu0
    %256 = vmatprep.mubr.f32.mxu0 0.0
    %257 = vmatmul.mubr.f32.gmra.mrb[0].mxu0 %v177
    %v258 = vpop.f32.mrb[0].mxu0
    %v259 = vadd.f32 %v167, %v258
    %v260 = vpop.f32.mrb[0].mxu0
    %261 = vdwg.mxu0
    %v262 = vmax.f32 %v249, 0.0
    %v263 = vmax.f32 %v254, 0.0
    %v264 = vmax.f32 %v259, 0.0
    %v265 = vld [vmem:[%s5] sm:$0xff]
    %v266 = vld [vmem:[%s5 + $0x8] sm:$0xff]
    %v267 = vld [vmem:[%s5 + $0x10] sm:$0xf]
    %269 = vset.pattern.permute.xlu0 0
    %270 = vperm.xlu0 %269, %v265
    %v271 = vpop.permute.xlu0 %270
    %274 = vset.pattern.permute.xlu0 0
    %275 = vperm.xlu0 %274, %v266
    %v276 = vpop.permute.xlu0 %275
    %279 = vset.pattern.permute.xlu0 0
    %280 = vperm.xlu0 %279, %v267
    %v281 = vpop.permute.xlu0 %280
    %v283 = vmul.f32 %v262, %v271
    %v284 = vmul.f32 %v263, %v276
    %v285 = vmul.f32 %v264, %v281
    %v286 = vadd.f32 %v283, %v284
    %v287 = vsel %vm61, %v285, 0.0
    %v288 = vadd.f32 %v286, %v287
    %v289 = vrot.slane %v288, 4
    %v290 = vadd.f32 %v288, %v289
    %v291 = vrot.slane %v290, 2
    %v292 = vadd.f32 %v290, %v291
    %v293 = vrot.slane %v292, 1
    %v294 = vadd.f32 %v292, %v293
    %v295 = vld [vmem:[#allocation2] sm:$0x1]
    %297 = vset.pattern.permute.xlu0 0
    %298 = vperm.xlu0 %297, %v295
    %v299 = vpop.permute.xlu0 %298
    %v301 = vlaneseq
    %v302 = vshrl.u32 %v301, 7
    %v303 = vsub.s32 0, %v302
    %v304 = vrot.slane %v299, %v303
    %v305 = vadd.f32 %v294, %v304
    %306 = vst [vmem:[#allocation3] sm:$0x1] %v305
    // Predicated region
    $region30: #{tpu_custom_call.1} parent=1 // pred_check
      _
    $region31: #{tpu_custom_call.1} parent=1 // pred_check_branch
      %308 = sbr.rel (0) target = $region33
    $region32: #{tpu_custom_call.1} parent=1 // pred_region
      %s310 = ssub.s32 16, 16
      %311 = vsyncadd [#allocation4], %s310
      %s313 = sshll.u32 [#allocation3], 4
      %s314 = int_to_ptr.vmem [resolvable:$true] %s313
      %316 = dma.vmem_to_hbm [thread:$0]  %s314, 16, %s7, [#allocation4]
    $region33: #{tpu_custom_call.1} parent=1 // pred_fallthru
      _
    // Predicated region
    $region34: #{tpu_custom_call.1} parent=1 // pred_check
      _
    $region35: #{tpu_custom_call.1} parent=1 // pred_check_branch
      %318 = sbr.rel (0) target = $region37
    $region36: #{tpu_custom_call.1} parent=1 // pred_region
      %319 = dma.done [#allocation4], 16
    $region37: #{tpu_custom_call.1} parent=1 // pred_fallthru
      _
    %320 = vsyncpa [#allocation4], 1

</llo_original>
